<compile_context>
chip_gen: v5e
topology: v5e:2x2
jax: 0.10.0
libtpu: 0.0.40
codegen_flags: <defaults>
</compile_context>

<pallas_src>
import functools

import jax
import jax.numpy as jnp
from jax.experimental import pallas as pl
from jax.experimental.pallas import tpu as pltpu


def _round_up(n: int, m: int) -> int:
    return ((n + m - 1) // m) * m


def _cdiv(a: int, b: int) -> int:
    return -(-a // b)


def shallow_kernel(x_ref, w1_ref, b1_ref, w2_ref, o_ref):
    # x_ref : (tm, in_dim)        batch tile
    # w1_ref: (in_dim, h_pad)     resident (pre-transposed, hidden-padded)
    # b1_ref: (1, h_pad)          resident (hidden-padded)
    # w2_ref: (h_pad, out_dim)    resident (pre-transposed, padded rows are 0)
    # o_ref : (tm, out_dim)
    h = jnp.dot(x_ref[...], w1_ref[...], preferred_element_type=jnp.float32)
    h = jax.nn.sigmoid(h + b1_ref[...])          # EUP transcendentals
    out = jnp.dot(h, w2_ref[...], preferred_element_type=jnp.float32)
    o_ref[...] = out.astype(o_ref.dtype)


def prepare_shallow_params(w1, b1, w2, param_dtype=jnp.float32):
    """One-time parameter preparation (call at init, NOT per forward).

    w1: (h_dim, in_dim), b1: (h_dim,), w2: (out_dim, h_dim)  [PyTorch layout]
    Returns (w1_t, b1_2d, w2_t) with the contraction dim first and the hidden
    dim zero-padded to a multiple of 128 (padded w2_t rows are zero, so the
    sigmoid(b1_pad)=0.5 of padded hidden units is exactly cancelled).
    """
    h_dim, in_dim = w1.shape
    out_dim = w2.shape[0]
    h_pad = _round_up(h_dim, 128)

    w1_t = jnp.asarray(w1, param_dtype).T                       # (in_dim, h_dim)
    b1_2d = jnp.asarray(b1, jnp.float32).reshape(1, h_dim)      # (1, h_dim)
    w2_t = jnp.asarray(w2, param_dtype).T                       # (h_dim, out_dim)
    if h_pad != h_dim:
        w1_t = jnp.pad(w1_t, ((0, 0), (0, h_pad - h_dim)))
        b1_2d = jnp.pad(b1_2d, ((0, 0), (0, h_pad - h_dim)))
        w2_t = jnp.pad(w2_t, ((0, h_pad - h_dim), (0, 0)))      # MUST stay zero
    return w1_t, b1_2d, w2_t


@functools.partial(jax.jit, static_argnames=("block_m", "use_pallas"))
def shallow_forward(x, w1_t, b1_2d, w2_t, *, block_m: int = 256,
                    use_pallas=None):
    """x: (B, in_dim) -> (B, out_dim). Matches the PyTorch module's forward."""
    x = jnp.asarray(x, jnp.float32)
    B, in_dim = x.shape
    h_pad = w1_t.shape[1]
    out_dim = w2_t.shape[1]

    if use_pallas is None:
        # At tiny batches the custom-call + grid-step overhead dominates; let
        # XLA's fused matmul handle it (padded params are numerically exact).
        use_pallas = B >= 256
    if not use_pallas:
        h = jax.nn.sigmoid(x.astype(w1_t.dtype) @ w1_t + b1_2d)
        return (h.astype(w2_t.dtype) @ w2_t).astype(jnp.float32)

    # --- batch tiling: split B near-evenly, pad only to a multiple of 8 rows.
    B8 = _round_up(B, 8)
    n_tiles = _cdiv(B8, block_m)
    if B8 > 256:
        n_tiles = max(n_tiles, 2)          # feed both v7x TensorCores
    tm = _round_up(_cdiv(B8, n_tiles), 8)  # multiple of 8, <= ~block_m
    grid_m = _cdiv(B8, tm)
    B_pad = grid_m * tm
    if B_pad != B:
        x = jnp.pad(x, ((0, B_pad - B), (0, 0)))

    # All fields are Python ints (static shapes) — advisory for XLA scheduling.
    cost = pl.CostEstimate(
        flops=2 * B_pad * (in_dim * h_pad + h_pad * out_dim),
        transcendentals=2 * B_pad * h_pad,          # exp + reciprocal / sigmoid
        bytes_accessed=4 * (B_pad * in_dim + in_dim * h_pad + h_pad
                            + h_pad * out_dim + B_pad * out_dim),
    )

    out = pl.pallas_call(
        shallow_kernel,
        out_shape=jax.ShapeDtypeStruct((B_pad, out_dim), jnp.float32),
        grid=(grid_m,),
        in_specs=[
            pl.BlockSpec((tm, in_dim), lambda i: (i, 0)),       # batch-tiled x
            pl.BlockSpec((in_dim, h_pad), lambda i: (0, 0)),    # resident W1^T
            pl.BlockSpec((1, h_pad), lambda i: (0, 0)),         # resident b1
            pl.BlockSpec((h_pad, out_dim), lambda i: (0, 0)),   # resident W2^T
        ],
        out_specs=pl.BlockSpec((tm, out_dim), lambda i: (i, 0)),
        compiler_params=pltpu.CompilerParams(
            dimension_semantics=("parallel",),
        ),
        cost_estimate=cost,
    )(x, w1_t, b1_2d, w2_t)

    if B_pad != B:
        out = out[:B]
    return out


def reference_forward(x, w1, b1, w2):
    h = jax.nn.sigmoid(x @ w1.T + b1)
    return h @ w2.T


if __name__ == "__main__":
    # Small shapes consistent with the module's forward.
    B, in_dim, h_dim, out_dim = 200, 32, 64, 16

    key = jax.random.PRNGKey(0)
    kx, kw1, kb1, kw2 = jax.random.split(key, 4)

    x = jax.random.normal(kx, (B, in_dim), dtype=jnp.float32)
    bound1 = 1.0 / (in_dim ** 0.5)
    w1 = jax.random.uniform(kw1, (h_dim, in_dim), jnp.float32, -bound1, bound1)
    b1 = jax.random.uniform(kb1, (h_dim,), jnp.float32, -bound1, bound1)
    bound2 = 1.0 / (h_dim ** 0.5)
    w2 = jax.random.uniform(kw2, (out_dim, h_dim), jnp.float32, -bound2, bound2)

    # Hoisted, one-time parameter prep (transpose / cast / hidden-pad).
    w1_t, b1_2d, w2_t = prepare_shallow_params(w1, b1, w2)

    # Force the Pallas path so the kernel itself is exercised.
    out = shallow_forward(x, w1_t, b1_2d, w2_t, use_pallas=True)
    out = jax.block_until_ready(out)

    ref = reference_forward(x, w1, b1, w2)
    assert out.shape == (B, out_dim)
    assert jnp.allclose(out, ref, atol=1e-5, rtol=1e-5), "mismatch vs reference"

    print("KERNEL_OK")
</pallas_src>

<mosaic_0001>
module attributes {stable_mosaic.version = 11 : i64} {
  func.func @shallow_kernel(%arg0: i32, %arg1: memref<200x32xf32, #tpu.memory_space<vmem>>, %arg2: memref<32x128xf32, #tpu.memory_space<vmem>>, %arg3: memref<1x128xf32, #tpu.memory_space<vmem>>, %arg4: memref<128x16xf32, #tpu.memory_space<vmem>>, %arg5: memref<200x16xf32, #tpu.memory_space<vmem>>) attributes {dimension_semantics = [#tpu.dimension_semantics<parallel>], iteration_bounds = array<i64: 1>, scalar_prefetch = 0 : i64, scratch_operands = 0 : i64, tpu.core_type = #tpu.core_type<tc>, window_params = [{transform_indices = @transform_0, window_bounds = array<i64: 200, 32>}, {pipeline_mode = #tpu.pipeline_mode<synchronous>, transform_indices = @transform_1, window_bounds = array<i64: 32, 128>}, {pipeline_mode = #tpu.pipeline_mode<synchronous>, transform_indices = @transform_2, window_bounds = array<i64: 1, 128>}, {pipeline_mode = #tpu.pipeline_mode<synchronous>, transform_indices = @transform_3, window_bounds = array<i64: 128, 16>}, {transform_indices = @transform_4, window_bounds = array<i64: 200, 16>}]} {
    %c0 = arith.constant 0 : index
    %c0_0 = arith.constant 0 : index
    %0 = vector.load %arg1[%c0, %c0_0] : memref<200x32xf32, #tpu.memory_space<vmem>>, vector<200x32xf32>
    %c0_1 = arith.constant 0 : index
    %c0_2 = arith.constant 0 : index
    %1 = vector.load %arg2[%c0_1, %c0_2] : memref<32x128xf32, #tpu.memory_space<vmem>>, vector<32x128xf32>
    %cst = arith.constant dense<0.000000e+00> : vector<200x128xf32>
    %2 = tpu.matmul %0, %1, %cst {dimension_numbers = #tpu.dot_dimension_numbers<[1], [0], [0], [1], [0, 0, 1, 1], [], []>} : vector<200x32xf32>, vector<32x128xf32>, vector<200x128xf32> -> vector<200x128xf32>
    %c0_3 = arith.constant 0 : index
    %c0_4 = arith.constant 0 : index
    %3 = vector.load %arg3[%c0_3, %c0_4] : memref<1x128xf32, #tpu.memory_space<vmem>>, vector<1x128xf32>
    %4 = vector.broadcast %3 : vector<1x128xf32> to vector<200x128xf32>
    %5 = arith.addf %2, %4 : vector<200x128xf32>
    %6 = arith.negf %5 : vector<200x128xf32>
    %7 = math.exp %6 : vector<200x128xf32>
    %cst_5 = arith.constant 1.000000e+00 : f32
    %8 = vector.broadcast %cst_5 : f32 to vector<200x128xf32>
    %9 = arith.addf %8, %7 : vector<200x128xf32>
    %10 = arith.divf %8, %9 : vector<200x128xf32>
    %c0_6 = arith.constant 0 : index
    %c0_7 = arith.constant 0 : index
    %11 = vector.load %arg4[%c0_6, %c0_7] : memref<128x16xf32, #tpu.memory_space<vmem>>, vector<128x16xf32>
    %cst_8 = arith.constant dense<0.000000e+00> : vector<200x16xf32>
    %12 = tpu.matmul %10, %11, %cst_8 {dimension_numbers = #tpu.dot_dimension_numbers<[1], [0], [0], [1], [0, 0, 1, 1], [], []>} : vector<200x128xf32>, vector<128x16xf32>, vector<200x16xf32> -> vector<200x16xf32>
    %c0_9 = arith.constant 0 : index
    %c0_10 = arith.constant 0 : index
    %13 = vector.load %arg5[%c0_9, %c0_10] : memref<200x16xf32, #tpu.memory_space<vmem>>, vector<200x16xf32>
    tpu.vector_store %arg5[%c0_9, %c0_10], %12 {strides = array<i32>} : memref<200x16xf32, #tpu.memory_space<vmem>>, vector<200x16xf32>,
    return
  }
  func.func @transform_0(%arg0: i32) -> (i32, i32) {
    %c0_i32 = arith.constant 0 : i32
    %c0_i32_0 = arith.constant 0 : i32
    return %arg0, %c0_i32 : i32, i32
  }
  func.func @transform_1(%arg0: i32) -> (i32, i32) {
    %c0_i32 = arith.constant 0 : i32
    %c0_i32_0 = arith.constant 0 : i32
    %c0_i32_1 = arith.constant 0 : i32
    return %c0_i32, %c0_i32_0 : i32, i32
  }
  func.func @transform_2(%arg0: i32) -> (i32, i32) {
    %c0_i32 = arith.constant 0 : i32
    %c0_i32_0 = arith.constant 0 : i32
    %c0_i32_1 = arith.constant 0 : i32
    return %c0_i32, %c0_i32_0 : i32, i32
  }
  func.func @transform_3(%arg0: i32) -> (i32, i32) {
    %c0_i32 = arith.constant 0 : i32
    %c0_i32_0 = arith.constant 0 : i32
    %c0_i32_1 = arith.constant 0 : i32
    return %c0_i32, %c0_i32_0 : i32, i32
  }
  func.func @transform_4(%arg0: i32) -> (i32, i32) {
    %c0_i32 = arith.constant 0 : i32
    %c0_i32_0 = arith.constant 0 : i32
    return %arg0, %c0_i32 : i32, i32
  }
}

</mosaic_0001>

<llo_original>
// kernel: shallow_forward.1
$region0: #{shallow_forward.1}
  #allocation0 [shape = 'u32[]', space=smem, size = 0x4, offset = 0x4, fixed_abs, tag = 'smem constant byte address 0x4 - core index']
  #allocation1 [shape = 'u32[72,128]{1,0:T(1,128)}', space=vmem, size = 0x9000, scoped, tag = 'internal scratch']
  %s0 = inlined_call_operand.vmem [shape: f32[200,32], index: 0, kind: input, shape index: {}]
  %s1 = inlined_call_operand.vmem [shape: f32[32,128], index: 1, kind: input, shape index: {}]
  %s2 = inlined_call_operand.vmem [shape: f32[1,128], index: 2, kind: input, shape index: {}]
  %s3 = inlined_call_operand.vmem [shape: f32[128,16], index: 3, kind: input, shape index: {}]
  %s4 = inlined_call_operand.vmem [shape: f32[200,16], index: 4, kind: output, shape index: {}]
  %s5 = sld [smem:[#allocation0]]
  $region26: #{shallow_forward.1} parent=0
    _
  %s7 = ssub.s32 1, %s5
  %s8 = scalar_select 0, %s7, %s5
  // Predicated region
  $region2: #{shallow_forward.1} parent=0 // pred_check
    _
  $region3: #{shallow_forward.1} parent=0 // pred_check_branch
    %10 = sbr.rel (0) target = $region5
  $region4: #{shallow_forward.1} parent=0 // pred_region
    _
  $region5: #{shallow_forward.1} parent=0 // pred_fallthru
    _
  // Predicated region
  $region6: #{shallow_forward.1} parent=0 // pred_check
    _
  $region7: #{shallow_forward.1} parent=0 // pred_check_branch
    %12 = sbr.rel (0) target = $region9
  $region8: #{shallow_forward.1} parent=0 // pred_region
    _
  $region9: #{shallow_forward.1} parent=0 // pred_fallthru
    _
  // Predicated region
  $region10: #{shallow_forward.1} parent=0 // pred_check
    _
  $region11: #{shallow_forward.1} parent=0 // pred_check_branch
    %14 = sbr.rel (0) target = $region13
  $region12: #{shallow_forward.1} parent=0 // pred_region
    _
  $region13: #{shallow_forward.1} parent=0 // pred_fallthru
    _
  // Predicated region
  $region14: #{shallow_forward.1} parent=0 // pred_check
    _
  $region15: #{shallow_forward.1} parent=0 // pred_check_branch
    %16 = sbr.rel (0) target = $region17
  $region16: #{shallow_forward.1} parent=0 // pred_region
    _
  $region17: #{shallow_forward.1} parent=0 // pred_fallthru
    _
  %v17 = vld [vmem:[%s0] sm:$0xff]
  %v18 = vld [vmem:[%s0 + $0x8] sm:$0xff]
  %v19 = vld [vmem:[%s0 + $0x10] sm:$0xff]
  %v20 = vld [vmem:[%s0 + $0x18] sm:$0xff]
  %v21 = vld [vmem:[%s0 + $0x20] sm:$0xff]
  %v22 = vld [vmem:[%s0 + $0x28] sm:$0xff]
  %v23 = vld [vmem:[%s0 + $0x30] sm:$0xff]
  %v24 = vld [vmem:[%s0 + $0x38] sm:$0xff]
  %v25 = vld [vmem:[%s0 + $0x40] sm:$0xff]
  %v26 = vld [vmem:[%s0 + $0x48] sm:$0xff]
  %v27 = vld [vmem:[%s0 + $0x50] sm:$0xff]
  %v28 = vld [vmem:[%s0 + $0x58] sm:$0xff]
  %v29 = vld [vmem:[%s0 + $0x60] sm:$0xff]
  %v30 = vld [vmem:[%s0 + $0x68] sm:$0xff]
  %v31 = vld [vmem:[%s0 + $0x70] sm:$0xff]
  %v32 = vld [vmem:[%s0 + $0x78] sm:$0xff]
  %v33 = vld [vmem:[%s0 + $0x80] sm:$0xff]
  %v34 = vld [vmem:[%s0 + $0x88] sm:$0xff]
  %v35 = vld [vmem:[%s0 + $0x90] sm:$0xff]
  %v36 = vld [vmem:[%s0 + $0x98] sm:$0xff]
  %v37 = vld [vmem:[%s0 + $0xa0] sm:$0xff]
  %v38 = vld [vmem:[%s0 + $0xa8] sm:$0xff]
  %v39 = vld [vmem:[%s0 + $0xb0] sm:$0xff]
  %v40 = vld [vmem:[%s0 + $0xb8] sm:$0xff]
  %v41 = vld [vmem:[%s0 + $0xc0] sm:$0xff]
  %v42 = vld [vmem:[%s1] sm:$0xff]
  %v43 = vld [vmem:[%s1 + $0x8] sm:$0xff]
  %v44 = vld [vmem:[%s1 + $0x10] sm:$0xff]
  %v45 = vld [vmem:[%s1 + $0x18] sm:$0xff]
  %v46 = vld [vmem:[%s2] sm:$0x1]
  %v48 = vperm.slane %v46, 0
  %vm50 = vcmask 261120
  %v52 = vsel %vm50, %v17, 0
  %v55 = vsel %vm50, %v18, 0
  %v58 = vsel %vm50, %v19, 0
  %v61 = vsel %vm50, %v20, 0
  %v64 = vsel %vm50, %v21, 0
  %v67 = vsel %vm50, %v22, 0
  %v70 = vsel %vm50, %v23, 0
  %v73 = vsel %vm50, %v24, 0
  %v76 = vsel %vm50, %v25, 0
  %v79 = vsel %vm50, %v26, 0
  %v82 = vsel %vm50, %v27, 0
  %v85 = vsel %vm50, %v28, 0
  %v88 = vsel %vm50, %v29, 0
  %v91 = vsel %vm50, %v30, 0
  %v94 = vsel %vm50, %v31, 0
  %v97 = vsel %vm50, %v32, 0
  %v100 = vsel %vm50, %v33, 0
  %v103 = vsel %vm50, %v34, 0
  %v106 = vsel %vm50, %v35, 0
  %v109 = vsel %vm50, %v36, 0
  %v112 = vsel %vm50, %v37, 0
  %v115 = vsel %vm50, %v38, 0
  %v118 = vsel %vm50, %v39, 0
  %v121 = vsel %vm50, %v40, 0
  %v124 = vsel %vm50, %v41, 0
  %126 = vmatpush.msra.mxu0 0.0
  %127 = vmatpush.msra.mxu0 0.0
  %128 = vmatpush.msra.mxu0 0.0
  %129 = vmatpush.msra.mxu0 0.0
  %130 = vmatpush.msra.mxu0 0.0
  %131 = vmatpush.msra.mxu0 0.0
  %132 = vmatpush.msra.mxu0 0.0
  %133 = vmatpush.msra.mxu0 0.0
  %134 = vmatpush.msra.mxu0 0.0
  %135 = vmatpush.msra.mxu0 0.0
  %136 = vmatpush.msra.mxu0 0.0
  %137 = vmatpush.msra.mxu0 0.0
  %138 = vmatpush.msra.mxu0 %v45
  %139 = vmatpush.msra.mxu0 %v44
  %140 = vmatpush.msra.mxu0 %v43
  %141 = vmatpush.msra.mxu0 %v42
  %142 = vmatmul.f32.gmra.mxu0 %v52
  %v143 = vpop.f32.mrf.mxu0
  %v144 = vadd.f32 %v48, %v143
  %145 = vmatmul.f32.gmra.mxu0 %v55
  %v146 = vpop.f32.mrf.mxu0
  %v147 = vadd.f32 %v48, %v146
  %148 = vmatmul.f32.gmra.mxu0 %v58
  %v149 = vpop.f32.mrf.mxu0
  %v150 = vadd.f32 %v48, %v149
  %151 = vmatmul.f32.gmra.mxu0 %v61
  %v152 = vpop.f32.mrf.mxu0
  %v153 = vadd.f32 %v48, %v152
  %154 = vmatmul.f32.gmra.mxu0 %v64
  %v155 = vpop.f32.mrf.mxu0
  %v156 = vadd.f32 %v48, %v155
  %157 = vmatmul.f32.gmra.mxu0 %v67
  %v158 = vpop.f32.mrf.mxu0
  %v159 = vadd.f32 %v48, %v158
  %160 = vmatmul.f32.gmra.mxu0 %v70
  %v161 = vpop.f32.mrf.mxu0
  %v162 = vadd.f32 %v48, %v161
  %163 = vmatmul.f32.gmra.mxu0 %v73
  %v164 = vpop.f32.mrf.mxu0
  %v165 = vadd.f32 %v48, %v164
  %166 = vmatmul.f32.gmra.mxu0 %v76
  %v167 = vpop.f32.mrf.mxu0
  %v168 = vadd.f32 %v48, %v167
  %169 = vmatmul.f32.gmra.mxu0 %v79
  %v170 = vpop.f32.mrf.mxu0
  %v171 = vadd.f32 %v48, %v170
  %172 = vmatmul.f32.gmra.mxu0 %v82
  %v173 = vpop.f32.mrf.mxu0
  %v174 = vadd.f32 %v48, %v173
  %175 = vmatmul.f32.gmra.mxu0 %v85
  %v176 = vpop.f32.mrf.mxu0
  %v177 = vadd.f32 %v48, %v176
  %178 = vmatmul.f32.gmra.mxu0 %v88
  %v179 = vpop.f32.mrf.mxu0
  %v180 = vadd.f32 %v48, %v179
  %181 = vmatmul.f32.gmra.mxu0 %v91
  %v182 = vpop.f32.mrf.mxu0
  %v183 = vadd.f32 %v48, %v182
  %184 = vmatmul.f32.gmra.mxu0 %v94
  %v185 = vpop.f32.mrf.mxu0
  %v186 = vadd.f32 %v48, %v185
  %187 = vmatmul.f32.gmra.mxu0 %v97
  %v188 = vpop.f32.mrf.mxu0
  %v189 = vadd.f32 %v48, %v188
  %190 = vmatmul.f32.gmra.mxu0 %v100
  %v191 = vpop.f32.mrf.mxu0
  %v192 = vadd.f32 %v48, %v191
  %193 = vmatmul.f32.gmra.mxu0 %v103
  %v194 = vpop.f32.mrf.mxu0
  %v195 = vadd.f32 %v48, %v194
  %196 = vmatmul.f32.gmra.mxu0 %v106
  %v197 = vpop.f32.mrf.mxu0
  %v198 = vadd.f32 %v48, %v197
  %199 = vmatmul.f32.gmra.mxu0 %v109
  %v200 = vpop.f32.mrf.mxu0
  %v201 = vadd.f32 %v48, %v200
  %202 = vmatmul.f32.gmra.mxu0 %v112
  %v203 = vpop.f32.mrf.mxu0
  %v204 = vadd.f32 %v48, %v203
  %205 = vmatmul.f32.gmra.mxu0 %v115
  %v206 = vpop.f32.mrf.mxu0
  %v207 = vadd.f32 %v48, %v206
  %208 = vmatmul.f32.gmra.mxu0 %v118
  %v209 = vpop.f32.mrf.mxu0
  %v210 = vadd.f32 %v48, %v209
  %211 = vmatmul.f32.gmra.mxu0 %v121
  %v212 = vpop.f32.mrf.mxu0
  %v213 = vadd.f32 %v48, %v212
  %214 = vmatmul.f32.gmra.mxu0 %v124
  %v215 = vpop.f32.mrf.mxu0
  %v216 = vadd.f32 %v48, %v215
  %217 = vdwg.mxu0
  %v218 = vxor.u32 %v144, 2147483648
  %v219 = vxor.u32 %v147, 2147483648
  %v220 = vxor.u32 %v150, 2147483648
  %v221 = vxor.u32 %v153, 2147483648
  %v222 = vxor.u32 %v156, 2147483648
  %v223 = vxor.u32 %v159, 2147483648
  %v224 = vxor.u32 %v162, 2147483648
  %v225 = vxor.u32 %v165, 2147483648
  %v226 = vxor.u32 %v168, 2147483648
  %v227 = vxor.u32 %v171, 2147483648
  %v228 = vxor.u32 %v174, 2147483648
  %v229 = vxor.u32 %v177, 2147483648
  %v230 = vxor.u32 %v180, 2147483648
  %v231 = vxor.u32 %v183, 2147483648
  %v232 = vxor.u32 %v186, 2147483648
  %v233 = vxor.u32 %v189, 2147483648
  %v234 = vxor.u32 %v192, 2147483648
  %v235 = vxor.u32 %v195, 2147483648
  %v236 = vxor.u32 %v198, 2147483648
  %v237 = vxor.u32 %v201, 2147483648
  %v238 = vxor.u32 %v204, 2147483648
  %v239 = vxor.u32 %v207, 2147483648
  %v240 = vxor.u32 %v210, 2147483648
  %v241 = vxor.u32 %v213, 2147483648
  %v242 = vxor.u32 %v216, 2147483648
  %v243 = vmul.f32 %v218, 1.442695
  %v244 = vpow.pop %v243
  %v245 = vmul.f32 %v219, 1.442695
  %v246 = vpow.pop %v245
  %v247 = vmul.f32 %v220, 1.442695
  %v248 = vpow.pop %v247
  %v249 = vmul.f32 %v221, 1.442695
  %v250 = vpow.pop %v249
  %v251 = vmul.f32 %v222, 1.442695
  %v252 = vpow.pop %v251
  %v253 = vmul.f32 %v223, 1.442695
  %v254 = vpow.pop %v253
  %v255 = vmul.f32 %v224, 1.442695
  %v256 = vpow.pop %v255
  %v257 = vmul.f32 %v225, 1.442695
  %v258 = vpow.pop %v257
  %v259 = vmul.f32 %v226, 1.442695
  %v260 = vpow.pop %v259
  %v261 = vmul.f32 %v227, 1.442695
  %v262 = vpow.pop %v261
  %v263 = vmul.f32 %v228, 1.442695
  %v264 = vpow.pop %v263
  %v265 = vmul.f32 %v229, 1.442695
  %v266 = vpow.pop %v265
  %v267 = vmul.f32 %v230, 1.442695
  %v268 = vpow.pop %v267
  %v269 = vmul.f32 %v231, 1.442695
  %v270 = vpow.pop %v269
  %v271 = vmul.f32 %v232, 1.442695
  %v272 = vpow.pop %v271
  %v273 = vmul.f32 %v233, 1.442695
  %v274 = vpow.pop %v273
  %v275 = vmul.f32 %v234, 1.442695
  %v276 = vpow.pop %v275
  %v277 = vmul.f32 %v235, 1.442695
  %v278 = vpow.pop %v277
  %v279 = vmul.f32 %v236, 1.442695
  %v280 = vpow.pop %v279
  %v281 = vmul.f32 %v237, 1.442695
  %v282 = vpow.pop %v281
  %v283 = vmul.f32 %v238, 1.442695
  %v284 = vpow.pop %v283
  %v285 = vmul.f32 %v239, 1.442695
  %v286 = vpow.pop %v285
  %v287 = vmul.f32 %v240, 1.442695
  %v288 = vpow.pop %v287
  %v289 = vmul.f32 %v241, 1.442695
  %v290 = vpow.pop %v289
  %v291 = vmul.f32 %v242, 1.442695
  %v292 = vpow.pop %v291
  %v293 = vadd.f32 %v244, 1.0
  %v294 = vadd.f32 %v246, 1.0
  %v295 = vadd.f32 %v248, 1.0
  %v296 = vadd.f32 %v250, 1.0
  %v297 = vadd.f32 %v252, 1.0
  %v298 = vadd.f32 %v254, 1.0
  %v299 = vadd.f32 %v256, 1.0
  %v300 = vadd.f32 %v258, 1.0
  %v301 = vadd.f32 %v260, 1.0
  %v302 = vadd.f32 %v262, 1.0
  %v303 = vadd.f32 %v264, 1.0
  %v304 = vadd.f32 %v266, 1.0
  %v305 = vadd.f32 %v268, 1.0
  %v306 = vadd.f32 %v270, 1.0
  %v307 = vadd.f32 %v272, 1.0
  %v308 = vadd.f32 %v274, 1.0
  %v309 = vadd.f32 %v276, 1.0
  %v310 = vadd.f32 %v278, 1.0
  %v311 = vadd.f32 %v280, 1.0
  %v312 = vadd.f32 %v282, 1.0
  %v313 = vadd.f32 %v284, 1.0
  %v314 = vadd.f32 %v286, 1.0
  %v315 = vadd.f32 %v288, 1.0
  %v316 = vadd.f32 %v290, 1.0
  %v317 = vadd.f32 %v292, 1.0
  %v318 = vrcp.pop %v293
  %v319 = vmul.f32 %v293, %v318
  %v320 = vsub.f32 1.0, %v319
  %v321 = vmul.f32 %v318, %v320
  %v322 = vadd.f32 %v318, %v321
  %vm323 = vweird.f32 %v293
  %vm324 = vweird.f32 %v318
  %vm325 = vmor %vm323, %vm324
  %v326 = vsel %vm325, %v318, %v322
  %v327 = vand.u32 2147483647, %v293
  %vm328 = vcmp.eq.f32.partialorder %v327, 8.507059e+37
  %v329 = vand.u32 %v293, 2147483648
  %v330 = vor.u32 1.1754944e-38, %v329
  %v331 = vsel %vm328, %v330, %v326
  %v332 = vmul.f32 1.0, %v331
  %v333 = vrcp.pop %v294
  %v334 = vmul.f32 %v294, %v333
  %v335 = vsub.f32 1.0, %v334
  %v336 = vmul.f32 %v333, %v335
  %v337 = vadd.f32 %v333, %v336
  %vm338 = vweird.f32 %v294
  %vm339 = vweird.f32 %v333
  %vm340 = vmor %vm338, %vm339
  %v341 = vsel %vm340, %v333, %v337
  %v342 = vand.u32 2147483647, %v294
  %vm343 = vcmp.eq.f32.partialorder %v342, 8.507059e+37
  %v344 = vand.u32 %v294, 2147483648
  %v345 = vor.u32 1.1754944e-38, %v344
  %v346 = vsel %vm343, %v345, %v341
  %v347 = vmul.f32 1.0, %v346
  %v348 = vrcp.pop %v295
  %v349 = vmul.f32 %v295, %v348
  %v350 = vsub.f32 1.0, %v349
  %v351 = vmul.f32 %v348, %v350
  %v352 = vadd.f32 %v348, %v351
  %vm353 = vweird.f32 %v295
  %vm354 = vweird.f32 %v348
  %vm355 = vmor %vm353, %vm354
  %v356 = vsel %vm355, %v348, %v352
  %v357 = vand.u32 2147483647, %v295
  %vm358 = vcmp.eq.f32.partialorder %v357, 8.507059e+37
  %v359 = vand.u32 %v295, 2147483648
  %v360 = vor.u32 1.1754944e-38, %v359
  %v361 = vsel %vm358, %v360, %v356
  %v362 = vmul.f32 1.0, %v361
  %v363 = vrcp.pop %v296
  %v364 = vmul.f32 %v296, %v363
  %v365 = vsub.f32 1.0, %v364
  %v366 = vmul.f32 %v363, %v365
  %v367 = vadd.f32 %v363, %v366
  %vm368 = vweird.f32 %v296
  %vm369 = vweird.f32 %v363
  %vm370 = vmor %vm368, %vm369
  %v371 = vsel %vm370, %v363, %v367
  %v372 = vand.u32 2147483647, %v296
  %vm373 = vcmp.eq.f32.partialorder %v372, 8.507059e+37
  %v374 = vand.u32 %v296, 2147483648
  %v375 = vor.u32 1.1754944e-38, %v374
  %v376 = vsel %vm373, %v375, %v371
  %v377 = vmul.f32 1.0, %v376
  %v378 = vrcp.pop %v297
  %v379 = vmul.f32 %v297, %v378
  %v380 = vsub.f32 1.0, %v379
  %v381 = vmul.f32 %v378, %v380
  %v382 = vadd.f32 %v378, %v381
  %vm383 = vweird.f32 %v297
  %vm384 = vweird.f32 %v378
  %vm385 = vmor %vm383, %vm384
  %v386 = vsel %vm385, %v378, %v382
  %v387 = vand.u32 2147483647, %v297
  %vm388 = vcmp.eq.f32.partialorder %v387, 8.507059e+37
  %v389 = vand.u32 %v297, 2147483648
  %v390 = vor.u32 1.1754944e-38, %v389
  %v391 = vsel %vm388, %v390, %v386
  %v392 = vmul.f32 1.0, %v391
  %v393 = vrcp.pop %v298
  %v394 = vmul.f32 %v298, %v393
  %v395 = vsub.f32 1.0, %v394
  %v396 = vmul.f32 %v393, %v395
  %v397 = vadd.f32 %v393, %v396
  %vm398 = vweird.f32 %v298
  %vm399 = vweird.f32 %v393
  %vm400 = vmor %vm398, %vm399
  %v401 = vsel %vm400, %v393, %v397
  %v402 = vand.u32 2147483647, %v298
  %vm403 = vcmp.eq.f32.partialorder %v402, 8.507059e+37
  %v404 = vand.u32 %v298, 2147483648
  %v405 = vor.u32 1.1754944e-38, %v404
  %v406 = vsel %vm403, %v405, %v401
  %v407 = vmul.f32 1.0, %v406
  %v408 = vrcp.pop %v299
  %v409 = vmul.f32 %v299, %v408
  %v410 = vsub.f32 1.0, %v409
  %v411 = vmul.f32 %v408, %v410
  %v412 = vadd.f32 %v408, %v411
  %vm413 = vweird.f32 %v299
  %vm414 = vweird.f32 %v408
  %vm415 = vmor %vm413, %vm414
  %v416 = vsel %vm415, %v408, %v412
  %v417 = vand.u32 2147483647, %v299
  %vm418 = vcmp.eq.f32.partialorder %v417, 8.507059e+37
  %v419 = vand.u32 %v299, 2147483648
  %v420 = vor.u32 1.1754944e-38, %v419
  %v421 = vsel %vm418, %v420, %v416
  %v422 = vmul.f32 1.0, %v421
  %v423 = vrcp.pop %v300
  %v424 = vmul.f32 %v300, %v423
  %v425 = vsub.f32 1.0, %v424
  %v426 = vmul.f32 %v423, %v425
  %v427 = vadd.f32 %v423, %v426
  %vm428 = vweird.f32 %v300
  %vm429 = vweird.f32 %v423
  %vm430 = vmor %vm428, %vm429
  %v431 = vsel %vm430, %v423, %v427
  %v432 = vand.u32 2147483647, %v300
  %vm433 = vcmp.eq.f32.partialorder %v432, 8.507059e+37
  %v434 = vand.u32 %v300, 2147483648
  %v435 = vor.u32 1.1754944e-38, %v434
  %v436 = vsel %vm433, %v435, %v431
  %v437 = vmul.f32 1.0, %v436
  %v438 = vrcp.pop %v301
  %v439 = vmul.f32 %v301, %v438
  %v440 = vsub.f32 1.0, %v439
  %v441 = vmul.f32 %v438, %v440
  %v442 = vadd.f32 %v438, %v441
  %vm443 = vweird.f32 %v301
  %vm444 = vweird.f32 %v438
  %vm445 = vmor %vm443, %vm444
  %v446 = vsel %vm445, %v438, %v442
  %v447 = vand.u32 2147483647, %v301
  %vm448 = vcmp.eq.f32.partialorder %v447, 8.507059e+37
  %v449 = vand.u32 %v301, 2147483648
  %v450 = vor.u32 1.1754944e-38, %v449
  %v451 = vsel %vm448, %v450, %v446
  %v452 = vmul.f32 1.0, %v451
  %v453 = vrcp.pop %v302
  %v454 = vmul.f32 %v302, %v453
  %v455 = vsub.f32 1.0, %v454
  %v456 = vmul.f32 %v453, %v455
  %v457 = vadd.f32 %v453, %v456
  %vm458 = vweird.f32 %v302
  %vm459 = vweird.f32 %v453
  %vm460 = vmor %vm458, %vm459
  %v461 = vsel %vm460, %v453, %v457
  %v462 = vand.u32 2147483647, %v302
  %vm463 = vcmp.eq.f32.partialorder %v462, 8.507059e+37
  %v464 = vand.u32 %v302, 2147483648
  %v465 = vor.u32 1.1754944e-38, %v464
  %v466 = vsel %vm463, %v465, %v461
  %v467 = vmul.f32 1.0, %v466
  %v468 = vrcp.pop %v303
  %v469 = vmul.f32 %v303, %v468
  %v470 = vsub.f32 1.0, %v469
  %v471 = vmul.f32 %v468, %v470
  %v472 = vadd.f32 %v468, %v471
  %vm473 = vweird.f32 %v303
  %vm474 = vweird.f32 %v468
  %vm475 = vmor %vm473, %vm474
  %v476 = vsel %vm475, %v468, %v472
  %v477 = vand.u32 2147483647, %v303
  %vm478 = vcmp.eq.f32.partialorder %v477, 8.507059e+37
  %v479 = vand.u32 %v303, 2147483648
  %v480 = vor.u32 1.1754944e-38, %v479
  %v481 = vsel %vm478, %v480, %v476
  %v482 = vmul.f32 1.0, %v481
  %v483 = vrcp.pop %v304
  %v484 = vmul.f32 %v304, %v483
  %v485 = vsub.f32 1.0, %v484
  %v486 = vmul.f32 %v483, %v485
  %v487 = vadd.f32 %v483, %v486
  %vm488 = vweird.f32 %v304
  %vm489 = vweird.f32 %v483
  %vm490 = vmor %vm488, %vm489
  %v491 = vsel %vm490, %v483, %v487
  %v492 = vand.u32 2147483647, %v304
  %vm493 = vcmp.eq.f32.partialorder %v492, 8.507059e+37
  %v494 = vand.u32 %v304, 2147483648
  %v495 = vor.u32 1.1754944e-38, %v494
  %v496 = vsel %vm493, %v495, %v491
  %v497 = vmul.f32 1.0, %v496
  %v498 = vrcp.pop %v305
  %v499 = vmul.f32 %v305, %v498
  %v500 = vsub.f32 1.0, %v499
  %v501 = vmul.f32 %v498, %v500
  %v502 = vadd.f32 %v498, %v501
  %vm503 = vweird.f32 %v305
  %vm504 = vweird.f32 %v498
  %vm505 = vmor %vm503, %vm504
  %v506 = vsel %vm505, %v498, %v502
  %v507 = vand.u32 2147483647, %v305
  %vm508 = vcmp.eq.f32.partialorder %v507, 8.507059e+37
  %v509 = vand.u32 %v305, 2147483648
  %v510 = vor.u32 1.1754944e-38, %v509
  %v511 = vsel %vm508, %v510, %v506
  %v512 = vmul.f32 1.0, %v511
  %v513 = vrcp.pop %v306
  %v514 = vmul.f32 %v306, %v513
  %v515 = vsub.f32 1.0, %v514
  %v516 = vmul.f32 %v513, %v515
  %v517 = vadd.f32 %v513, %v516
  %vm518 = vweird.f32 %v306
  %vm519 = vweird.f32 %v513
  %vm520 = vmor %vm518, %vm519
  %v521 = vsel %vm520, %v513, %v517
  %v522 = vand.u32 2147483647, %v306
  %vm523 = vcmp.eq.f32.partialorder %v522, 8.507059e+37
  %v524 = vand.u32 %v306, 2147483648
  %v525 = vor.u32 1.1754944e-38, %v524
  %v526 = vsel %vm523, %v525, %v521
  %v527 = vmul.f32 1.0, %v526
  %v528 = vrcp.pop %v307
  %v529 = vmul.f32 %v307, %v528
  %v530 = vsub.f32 1.0, %v529
  %v531 = vmul.f32 %v528, %v530
  %v532 = vadd.f32 %v528, %v531
  %vm533 = vweird.f32 %v307
  %vm534 = vweird.f32 %v528
  %vm535 = vmor %vm533, %vm534
  %v536 = vsel %vm535, %v528, %v532
  %v537 = vand.u32 2147483647, %v307
  %vm538 = vcmp.eq.f32.partialorder %v537, 8.507059e+37
  %v539 = vand.u32 %v307, 2147483648
  %v540 = vor.u32 1.1754944e-38, %v539
  %v541 = vsel %vm538, %v540, %v536
  %v542 = vmul.f32 1.0, %v541
  %v543 = vrcp.pop %v308
  %v544 = vmul.f32 %v308, %v543
  %v545 = vsub.f32 1.0, %v544
  %v546 = vmul.f32 %v543, %v545
  %v547 = vadd.f32 %v543, %v546
  %vm548 = vweird.f32 %v308
  %vm549 = vweird.f32 %v543
  %vm550 = vmor %vm548, %vm549
  %v551 = vsel %vm550, %v543, %v547
  %v552 = vand.u32 2147483647, %v308
  %vm553 = vcmp.eq.f32.partialorder %v552, 8.507059e+37
  %v554 = vand.u32 %v308, 2147483648
  %v555 = vor.u32 1.1754944e-38, %v554
  %v556 = vsel %vm553, %v555, %v551
  %v557 = vmul.f32 1.0, %v556
  %v558 = vrcp.pop %v309
  %v559 = vmul.f32 %v309, %v558
  %v560 = vsub.f32 1.0, %v559
  %v561 = vmul.f32 %v558, %v560
  %v562 = vadd.f32 %v558, %v561
  %vm563 = vweird.f32 %v309
  %vm564 = vweird.f32 %v558
  %vm565 = vmor %vm563, %vm564
  %v566 = vsel %vm565, %v558, %v562
  %v567 = vand.u32 2147483647, %v309
  %vm568 = vcmp.eq.f32.partialorder %v567, 8.507059e+37
  %v569 = vand.u32 %v309, 2147483648
  %v570 = vor.u32 1.1754944e-38, %v569
  %v571 = vsel %vm568, %v570, %v566
  %v572 = vmul.f32 1.0, %v571
  %v573 = vrcp.pop %v310
  %v574 = vmul.f32 %v310, %v573
  %v575 = vsub.f32 1.0, %v574
  %v576 = vmul.f32 %v573, %v575
  %v577 = vadd.f32 %v573, %v576
  %vm578 = vweird.f32 %v310
  %vm579 = vweird.f32 %v573
  %vm580 = vmor %vm578, %vm579
  %v581 = vsel %vm580, %v573, %v577
  %v582 = vand.u32 2147483647, %v310
  %vm583 = vcmp.eq.f32.partialorder %v582, 8.507059e+37
  %v584 = vand.u32 %v310, 2147483648
  %v585 = vor.u32 1.1754944e-38, %v584
  %v586 = vsel %vm583, %v585, %v581
  %v587 = vmul.f32 1.0, %v586
  %v588 = vrcp.pop %v311
  %v589 = vmul.f32 %v311, %v588
  %v590 = vsub.f32 1.0, %v589
  %v591 = vmul.f32 %v588, %v590
  %v592 = vadd.f32 %v588, %v591
  %vm593 = vweird.f32 %v311
  %vm594 = vweird.f32 %v588
  %vm595 = vmor %vm593, %vm594
  %v596 = vsel %vm595, %v588, %v592
  %v597 = vand.u32 2147483647, %v311
  %vm598 = vcmp.eq.f32.partialorder %v597, 8.507059e+37
  %v599 = vand.u32 %v311, 2147483648
  %v600 = vor.u32 1.1754944e-38, %v599
  %v601 = vsel %vm598, %v600, %v596
  %v602 = vmul.f32 1.0, %v601
  %v603 = vrcp.pop %v312
  %v604 = vmul.f32 %v312, %v603
  %v605 = vsub.f32 1.0, %v604
  %v606 = vmul.f32 %v603, %v605
  %v607 = vadd.f32 %v603, %v606
  %vm608 = vweird.f32 %v312
  %vm609 = vweird.f32 %v603
  %vm610 = vmor %vm608, %vm609
  %v611 = vsel %vm610, %v603, %v607
  %v612 = vand.u32 2147483647, %v312
  %vm613 = vcmp.eq.f32.partialorder %v612, 8.507059e+37
  %v614 = vand.u32 %v312, 2147483648
  %v615 = vor.u32 1.1754944e-38, %v614
  %v616 = vsel %vm613, %v615, %v611
  %v617 = vmul.f32 1.0, %v616
  %v618 = vrcp.pop %v313
  %v619 = vmul.f32 %v313, %v618
  %v620 = vsub.f32 1.0, %v619
  %v621 = vmul.f32 %v618, %v620
  %v622 = vadd.f32 %v618, %v621
  %vm623 = vweird.f32 %v313
  %vm624 = vweird.f32 %v618
  %vm625 = vmor %vm623, %vm624
  %v626 = vsel %vm625, %v618, %v622
  %v627 = vand.u32 2147483647, %v313
  %vm628 = vcmp.eq.f32.partialorder %v627, 8.507059e+37
  %v629 = vand.u32 %v313, 2147483648
  %v630 = vor.u32 1.1754944e-38, %v629
  %v631 = vsel %vm628, %v630, %v626
  %v632 = vmul.f32 1.0, %v631
  %v633 = vrcp.pop %v314
  %v634 = vmul.f32 %v314, %v633
  %v635 = vsub.f32 1.0, %v634
  %v636 = vmul.f32 %v633, %v635
  %v637 = vadd.f32 %v633, %v636
  %vm638 = vweird.f32 %v314
  %vm639 = vweird.f32 %v633
  %vm640 = vmor %vm638, %vm639
  %v641 = vsel %vm640, %v633, %v637
  %v642 = vand.u32 2147483647, %v314
  %vm643 = vcmp.eq.f32.partialorder %v642, 8.507059e+37
  %v644 = vand.u32 %v314, 2147483648
  %v645 = vor.u32 1.1754944e-38, %v644
  %v646 = vsel %vm643, %v645, %v641
  %v647 = vmul.f32 1.0, %v646
  %v648 = vrcp.pop %v315
  %v649 = vmul.f32 %v315, %v648
  %v650 = vsub.f32 1.0, %v649
  %v651 = vmul.f32 %v648, %v650
  %v652 = vadd.f32 %v648, %v651
  %vm653 = vweird.f32 %v315
  %vm654 = vweird.f32 %v648
  %vm655 = vmor %vm653, %vm654
  %v656 = vsel %vm655, %v648, %v652
  %v657 = vand.u32 2147483647, %v315
  %vm658 = vcmp.eq.f32.partialorder %v657, 8.507059e+37
  %v659 = vand.u32 %v315, 2147483648
  %v660 = vor.u32 1.1754944e-38, %v659
  %v661 = vsel %vm658, %v660, %v656
  %v662 = vmul.f32 1.0, %v661
  %v663 = vrcp.pop %v316
  %v664 = vmul.f32 %v316, %v663
  %v665 = vsub.f32 1.0, %v664
  %v666 = vmul.f32 %v663, %v665
  %v667 = vadd.f32 %v663, %v666
  %vm668 = vweird.f32 %v316
  %vm669 = vweird.f32 %v663
  %vm670 = vmor %vm668, %vm669
  %v671 = vsel %vm670, %v663, %v667
  %v672 = vand.u32 2147483647, %v316
  %vm673 = vcmp.eq.f32.partialorder %v672, 8.507059e+37
  %v674 = vand.u32 %v316, 2147483648
  %v675 = vor.u32 1.1754944e-38, %v674
  %v676 = vsel %vm673, %v675, %v671
  %v677 = vmul.f32 1.0, %v676
  %v678 = vrcp.pop %v317
  %v679 = vmul.f32 %v317, %v678
  %v680 = vsub.f32 1.0, %v679
  %v681 = vmul.f32 %v678, %v680
  %v682 = vadd.f32 %v678, %v681
  %vm683 = vweird.f32 %v317
  %vm684 = vweird.f32 %v678
  %vm685 = vmor %vm683, %vm684
  %v686 = vsel %vm685, %v678, %v682
  %v687 = vand.u32 2147483647, %v317
  %vm688 = vcmp.eq.f32.partialorder %v687, 8.507059e+37
  %v689 = vand.u32 %v317, 2147483648
  %v690 = vor.u32 1.1754944e-38, %v689
  %v691 = vsel %vm688, %v690, %v686
  %v692 = vmul.f32 1.0, %v691
  %v693 = vld [vmem:[%s3] sm:$0xff]
  %v694 = vld [vmem:[%s3 + $0x8] sm:$0xff]
  %v695 = vld [vmem:[%s3 + $0x10] sm:$0xff]
  %v696 = vld [vmem:[%s3 + $0x18] sm:$0xff]
  %v697 = vld [vmem:[%s3 + $0x20] sm:$0xff]
  %v698 = vld [vmem:[%s3 + $0x28] sm:$0xff]
  %v699 = vld [vmem:[%s3 + $0x30] sm:$0xff]
  %v700 = vld [vmem:[%s3 + $0x38] sm:$0xff]
  %v701 = vld [vmem:[%s3 + $0x40] sm:$0xff]
  %v702 = vld [vmem:[%s3 + $0x48] sm:$0xff]
  %v703 = vld [vmem:[%s3 + $0x50] sm:$0xff]
  %v704 = vld [vmem:[%s3 + $0x58] sm:$0xff]
  %v705 = vld [vmem:[%s3 + $0x60] sm:$0xff]
  %v706 = vld [vmem:[%s3 + $0x68] sm:$0xff]
  %v707 = vld [vmem:[%s3 + $0x70] sm:$0xff]
  %v708 = vld [vmem:[%s3 + $0x78] sm:$0xff]
  %709 = vmatpush.msra.mxu0 %v708
  %710 = vmatpush.msra.mxu0 %v707
  %711 = vmatpush.msra.mxu0 %v706
  %712 = vmatpush.msra.mxu0 %v705
  %713 = vmatpush.msra.mxu0 %v704
  %714 = vmatpush.msra.mxu0 %v703
  %715 = vmatpush.msra.mxu0 %v702
  %716 = vmatpush.msra.mxu0 %v701
  %717 = vmatpush.msra.mxu0 %v700
  %718 = vmatpush.msra.mxu0 %v699
  %719 = vmatpush.msra.mxu0 %v698
  %720 = vmatpush.msra.mxu0 %v697
  %721 = vmatpush.msra.mxu0 %v696
  %722 = vmatpush.msra.mxu0 %v695
  %723 = vmatpush.msra.mxu0 %v694
  %724 = vmatpush.msra.mxu0 %v693
  %725 = vmatmul.f32.gmra.mxu0 %v332
  %v726 = vpop.f32.mrf.mxu0
  %v727 = vadd.f32 0.0, %v726
  %728 = vmatmul.f32.gmra.mxu0 %v347
  %v729 = vpop.f32.mrf.mxu0
  %v730 = vadd.f32 0.0, %v729
  %731 = vmatmul.f32.gmra.mxu0 %v362
  %v732 = vpop.f32.mrf.mxu0
  %v733 = vadd.f32 0.0, %v732
  %734 = vmatmul.f32.gmra.mxu0 %v377
  %v735 = vpop.f32.mrf.mxu0
  %v736 = vadd.f32 0.0, %v735
  %737 = vmatmul.f32.gmra.mxu0 %v392
  %v738 = vpop.f32.mrf.mxu0
  %v739 = vadd.f32 0.0, %v738
  %740 = vmatmul.f32.gmra.mxu0 %v407
  %v741 = vpop.f32.mrf.mxu0
  %v742 = vadd.f32 0.0, %v741
  %743 = vmatmul.f32.gmra.mxu0 %v422
  %v744 = vpop.f32.mrf.mxu0
  %v745 = vadd.f32 0.0, %v744
  %746 = vmatmul.f32.gmra.mxu0 %v437
  %v747 = vpop.f32.mrf.mxu0
  %v748 = vadd.f32 0.0, %v747
  %749 = vmatmul.f32.gmra.mxu0 %v452
  %v750 = vpop.f32.mrf.mxu0
  %v751 = vadd.f32 0.0, %v750
  %752 = vmatmul.f32.gmra.mxu0 %v467
  %v753 = vpop.f32.mrf.mxu0
  %v754 = vadd.f32 0.0, %v753
  %755 = vmatmul.f32.gmra.mxu0 %v482
  %v756 = vpop.f32.mrf.mxu0
  %v757 = vadd.f32 0.0, %v756
  %758 = vmatmul.f32.gmra.mxu0 %v497
  %v759 = vpop.f32.mrf.mxu0
  %v760 = vadd.f32 0.0, %v759
  %761 = vmatmul.f32.gmra.mxu0 %v512
  %v762 = vpop.f32.mrf.mxu0
  %v763 = vadd.f32 0.0, %v762
  %764 = vmatmul.f32.gmra.mxu0 %v527
  %v765 = vpop.f32.mrf.mxu0
  %v766 = vadd.f32 0.0, %v765
  %767 = vmatmul.f32.gmra.mxu0 %v542
  %v768 = vpop.f32.mrf.mxu0
  %v769 = vadd.f32 0.0, %v768
  %770 = vmatmul.f32.gmra.mxu0 %v557
  %v771 = vpop.f32.mrf.mxu0
  %v772 = vadd.f32 0.0, %v771
  %773 = vmatmul.f32.gmra.mxu0 %v572
  %v774 = vpop.f32.mrf.mxu0
  %v775 = vadd.f32 0.0, %v774
  %776 = vmatmul.f32.gmra.mxu0 %v587
  %v777 = vpop.f32.mrf.mxu0
  %v778 = vadd.f32 0.0, %v777
  %779 = vmatmul.f32.gmra.mxu0 %v602
  %v780 = vpop.f32.mrf.mxu0
  %v781 = vadd.f32 0.0, %v780
  %782 = vmatmul.f32.gmra.mxu0 %v617
  %v783 = vpop.f32.mrf.mxu0
  %v784 = vadd.f32 0.0, %v783
  %785 = vmatmul.f32.gmra.mxu0 %v632
  %v786 = vpop.f32.mrf.mxu0
  %v787 = vadd.f32 0.0, %v786
  %788 = vmatmul.f32.gmra.mxu0 %v647
  %v789 = vpop.f32.mrf.mxu0
  %v790 = vadd.f32 0.0, %v789
  %791 = vmatmul.f32.gmra.mxu0 %v662
  %v792 = vpop.f32.mrf.mxu0
  %v793 = vadd.f32 0.0, %v792
  %794 = vmatmul.f32.gmra.mxu0 %v677
  %v795 = vpop.f32.mrf.mxu0
  %v796 = vadd.f32 0.0, %v795
  %797 = vmatmul.f32.gmra.mxu0 %v692
  %v798 = vpop.f32.mrf.mxu0
  %v799 = vadd.f32 0.0, %v798
  %800 = vdwg.mxu0
  %vm801 = vcmask 130048
  %802 = vst.msk [vmem:[%s4] sm:$0xff] %vm801, %v727
  %803 = vst.msk [vmem:[%s4 + $0x8] sm:$0xff] %vm801, %v730
  %804 = vst.msk [vmem:[%s4 + $0x10] sm:$0xff] %vm801, %v733
  %805 = vst.msk [vmem:[%s4 + $0x18] sm:$0xff] %vm801, %v736
  %806 = vst.msk [vmem:[%s4 + $0x20] sm:$0xff] %vm801, %v739
  %807 = vst.msk [vmem:[%s4 + $0x28] sm:$0xff] %vm801, %v742
  %808 = vst.msk [vmem:[%s4 + $0x30] sm:$0xff] %vm801, %v745
  %809 = vst.msk [vmem:[%s4 + $0x38] sm:$0xff] %vm801, %v748
  %810 = vst.msk [vmem:[%s4 + $0x40] sm:$0xff] %vm801, %v751
  %811 = vst.msk [vmem:[%s4 + $0x48] sm:$0xff] %vm801, %v754
  %812 = vst.msk [vmem:[%s4 + $0x50] sm:$0xff] %vm801, %v757
  %813 = vst.msk [vmem:[%s4 + $0x58] sm:$0xff] %vm801, %v760
  %814 = vst.msk [vmem:[%s4 + $0x60] sm:$0xff] %vm801, %v763
  %815 = vst.msk [vmem:[%s4 + $0x68] sm:$0xff] %vm801, %v766
  %816 = vst.msk [vmem:[%s4 + $0x70] sm:$0xff] %vm801, %v769
  %817 = vst.msk [vmem:[%s4 + $0x78] sm:$0xff] %vm801, %v772
  %818 = vst.msk [vmem:[%s4 + $0x80] sm:$0xff] %vm801, %v775
  %819 = vst.msk [vmem:[%s4 + $0x88] sm:$0xff] %vm801, %v778
  %820 = vst.msk [vmem:[%s4 + $0x90] sm:$0xff] %vm801, %v781
  %821 = vst.msk [vmem:[%s4 + $0x98] sm:$0xff] %vm801, %v784
  %822 = vst.msk [vmem:[%s4 + $0xa0] sm:$0xff] %vm801, %v787
  %823 = vst.msk [vmem:[%s4 + $0xa8] sm:$0xff] %vm801, %v790
  %824 = vst.msk [vmem:[%s4 + $0xb0] sm:$0xff] %vm801, %v793
  %825 = vst.msk [vmem:[%s4 + $0xb8] sm:$0xff] %vm801, %v796
  %826 = vst.msk [vmem:[%s4 + $0xc0] sm:$0xff] %vm801, %v799
  // Predicated region
  $region18: #{shallow_forward.1} parent=0 // pred_check
    _
  $region19: #{shallow_forward.1} parent=0 // pred_check_branch
    %828 = sbr.rel (0) target = $region21
  $region20: #{shallow_forward.1} parent=0 // pred_region
    _
  $region21: #{shallow_forward.1} parent=0 // pred_fallthru
    _
  // Predicated region
  $region22: #{shallow_forward.1} parent=0 // pred_check
    _
  $region23: #{shallow_forward.1} parent=0 // pred_check_branch
    %830 = sbr.rel (0) target = $region25
  $region24: #{shallow_forward.1} parent=0 // pred_region
    _
  $region25: #{shallow_forward.1} parent=0 // pred_fallthru
    _

</llo_original>
